<compile_context>
chip_gen: v7x
topology: tpu7x:2x2x1
jax: 0.10.0
libtpu: 0.0.40
codegen_flags: <defaults>
</compile_context>

<pallas_src>
import jax
import jax.numpy as jnp
from jax.experimental import pallas as pl
from jax.experimental.pallas import tpu as pltpu

_SLAB_LANES = 512       # lane-dense last dim, large multiple of 128 -> unmasked vst
_MAX_BLOCK_ROWS = 512   # (512, 512) f32 block = 1 MiB; double-buffered in+out = 4 MiB


def _round_up(a, b):
    return ((a + b - 1) // b) * b


def scale_kernel(w_ref, x_ref, o_ref):
    # w_ref: (1, 1) f32 in SMEM (scalar weight, resident across the grid).
    # x_ref / o_ref: (block_rows, _SLAB_LANES) f32 in VMEM.
    # Pure VPU elementwise multiply; memory-bound, full (8,128) tiles per vreg.
    o_ref[...] = x_ref[...] * w_ref[0, 0]


def simple_model_forward(x, w):
    """Pallas equivalent of SimpleModel.forward: nn.Linear(1, 1, bias=False)(x).

    x: [N, 1] float32
    w: [1, 1] float32  (torch convention: [out_features, in_features])
    returns: [N, 1] float32  (== x @ w.T)
    """
    n = x.shape[0]

    # Lane-dense repack: [N, 1] -> flat [N] -> (rows, 512) slab.
    rows_needed = pl.cdiv(n, _SLAB_LANES)
    block_rows = min(_MAX_BLOCK_ROWS, _round_up(rows_needed, 8))
    padded_rows = _round_up(rows_needed, block_rows)
    padded_n = padded_rows * _SLAB_LANES

    x_flat = x.reshape(-1)                      # [N,1] -> [N]: metadata-only reshape
    if padded_n != n:                           # only copy when padding is actually needed
        x_flat = jnp.pad(x_flat, (0, padded_n - n))
    x_slab = x_flat.reshape(padded_rows, _SLAB_LANES)

    grid = (padded_rows // block_rows,)

    out_slab = pl.pallas_call(
        scale_kernel,
        out_shape=jax.ShapeDtypeStruct((padded_rows, _SLAB_LANES), jnp.float32),
        grid=grid,
        in_specs=[
            # (1,1) weight lives in SMEM, resident across the whole grid.
            pl.BlockSpec(memory_space=pltpu.MemorySpace.SMEM),
            pl.BlockSpec((block_rows, _SLAB_LANES), lambda i: (i, 0)),
        ],
        out_specs=pl.BlockSpec((block_rows, _SLAB_LANES), lambda i: (i, 0)),
        compiler_params=pltpu.CompilerParams(
            dimension_semantics=("parallel",),
        ),
    )(w, x_slab)

    # Back to the original [N, 1] layout (drop zero padding only if it exists).
    out_flat = out_slab.reshape(-1)
    if padded_n != n:
        out_flat = out_flat[:n]
    return out_flat.reshape(n, 1)


# TODO(synk): backward()/MSELoss/SGD step is host-side training logic, not part
# of the module's forward pass; only the forward is implemented as a Pallas
# kernel here. For the tiny N=8 online-training use case a fused
# forward+loss+update kernel (or plain jitted JAX) would be the right tool.


if __name__ == "__main__":
    key = jax.random.PRNGKey(0)
    kx, kw = jax.random.split(key)

    # Batch of 8 scalar samples, shaped [8, 1] as nn.Linear(1, 1) expects
    # (last dim = in_features = 1).
    x = jax.random.normal(kx, (8, 1), dtype=jnp.float32)

    # Weight init mimicking torch Linear default U(-1/sqrt(fan_in), 1/sqrt(fan_in)),
    # fan_in = 1 -> U(-1, 1).
    w = jax.random.uniform(kw, (1, 1), dtype=jnp.float32, minval=-1.0, maxval=1.0)

    out = jax.block_until_ready(simple_model_forward(x, w))

    # Reference check against plain JAX linear.
    ref = x @ w.T
    assert out.shape == (8, 1), out.shape
    assert jnp.allclose(out, ref, atol=1e-6), (out, ref)

    # Larger batch that exercises the multi-block, padded tiling path
    # (rows_needed > _MAX_BLOCK_ROWS and N not a multiple of the slab width).
    xb = jax.random.normal(kx, (300_001, 1), dtype=jnp.float32)
    outb = jax.block_until_ready(simple_model_forward(xb, w))
    refb = xb @ w.T
    assert outb.shape == xb.shape
    assert jnp.allclose(outb, refb, atol=1e-6)

    print("KERNEL_OK")
</pallas_src>

<mosaic_0001>
module attributes {stable_mosaic.version = 11 : i64} {
  func.func @scale_kernel(%arg0: i32, %arg1: memref<1x1xf32, #tpu.memory_space<smem>>, %arg2: memref<8x512xf32, #tpu.memory_space<vmem>>, %arg3: memref<8x512xf32, #tpu.memory_space<vmem>>) attributes {dimension_semantics = [#tpu.dimension_semantics<parallel>], iteration_bounds = array<i64: 1>, scalar_prefetch = 0 : i64, scratch_operands = 0 : i64, tpu.core_type = #tpu.core_type<tc>, window_params = [{transform_indices = @transform_0, window_bounds = array<i64: 1, 1>}, {transform_indices = @transform_1, window_bounds = array<i64: 8, 512>}, {transform_indices = @transform_2, window_bounds = array<i64: 8, 512>}]} {
    %c0 = arith.constant 0 : index
    %c0_0 = arith.constant 0 : index
    %0 = vector.load %arg2[%c0, %c0_0] : memref<8x512xf32, #tpu.memory_space<vmem>>, vector<8x512xf32>
    %c0_1 = arith.constant 0 : index
    %c0_2 = arith.constant 0 : index
    %1 = memref.load %arg1[%c0_1, %c0_2] : memref<1x1xf32, #tpu.memory_space<smem>>
    %2 = vector.broadcast %1 : f32 to vector<8x512xf32>
    %3 = arith.mulf %0, %2 : vector<8x512xf32>
    %c0_3 = arith.constant 0 : index
    %c0_4 = arith.constant 0 : index
    %4 = vector.load %arg3[%c0_3, %c0_4] : memref<8x512xf32, #tpu.memory_space<vmem>>, vector<8x512xf32>
    tpu.vector_store %arg3[%c0_3, %c0_4], %3 {strides = array<i32>} : memref<8x512xf32, #tpu.memory_space<vmem>>, vector<8x512xf32>,
    return
  }
  func.func @transform_0(%arg0: i32) -> (i32, i32) {
    %c0_i32 = arith.constant 0 : i32
    %c0_i32_0 = arith.constant 0 : i32
    %c0_i32_1 = arith.constant 0 : i32
    return %c0_i32, %c0_i32_0 : i32, i32
  }
  func.func @transform_1(%arg0: i32) -> (i32, i32) {
    %c0_i32 = arith.constant 0 : i32
    %c0_i32_0 = arith.constant 0 : i32
    return %arg0, %c0_i32 : i32, i32
  }
  func.func @transform_2(%arg0: i32) -> (i32, i32) {
    %c0_i32 = arith.constant 0 : i32
    %c0_i32_0 = arith.constant 0 : i32
    return %arg0, %c0_i32 : i32, i32
  }
}

</mosaic_0001>

<llo_original>
// kernel: tpu_custom_call.1
$region0: #{tpu_custom_call.1}
  #allocation0 [shape = 'u32[]', space=smem, size = 0x4, offset = 0x4, fixed_abs, tag = 'smem constant byte address 0x4 - core index']
  #allocation1 [shape = 'u32[144,128]{1,0:T(1,128)}', space=vmem, size = 0x12000, scoped, tag = 'internal scratch']
  #allocation2 [shape = 'f32[1,1]{1,0:T(1,128)S(6)}', space=smem, size = 0x200, scoped, tag = 'scoped memory for tpu_custom_call.1']
  %s0 = inlined_call_operand.<no memory space> [shape: f32[1,1], index: 0, kind: input, shape index: {}]
  %s1 = inlined_call_operand.hbm [shape: f32[8,512], index: 1, kind: input, shape index: {}]
  %s2 = inlined_call_operand.hbm [shape: f32[8,512], index: 2, kind: output, shape index: {}]
  %s3 = sld [smem:[#allocation0]]
  $region22: #{tpu_custom_call.1} parent=0
    _
  %s5 = ssub.s32 1, %s3
  %s6 = scalar_select 0, %s5, %s3
  %7 = sst [smem:[#allocation2]] %s0
  $region1: #{tpu_custom_call.1} parent=0
    #allocation3 [shape = 'u8[16384]{0}', space=vmem, size = 0x4000, scoped, tag = 'input window, operand 1, single buffered']
    #allocation4 [shape = 's32[1]{0}', space=sflag, size = 0x4, scoped, tag = 'scoped memory for tpu_custom_call.1']
    #allocation5 [shape = 's32[1]{0}', space=sflag, size = 0x4, scoped, tag = 'scoped memory for tpu_custom_call.1']
    #allocation6 [shape = 'u8[16384]{0}', space=vmem, size = 0x4000, scoped, tag = 'output window, operand 0, single buffered']
    %8 = vsyncpa [#allocation4], 0
    %9 = vsyncpa [#allocation5], 0
    // Predicated region
    $region2: #{tpu_custom_call.1} parent=1 // pred_check
      _
    $region3: #{tpu_custom_call.1} parent=1 // pred_check_branch
      %11 = sbr.rel (0) target = $region5
    $region4: #{tpu_custom_call.1} parent=1 // pred_region
      _
    $region5: #{tpu_custom_call.1} parent=1 // pred_fallthru
      _
    // Predicated region
    $region6: #{tpu_custom_call.1} parent=1 // pred_check
      _
    $region7: #{tpu_custom_call.1} parent=1 // pred_check_branch
      %13 = sbr.rel (0) target = $region9
    $region8: #{tpu_custom_call.1} parent=1 // pred_region
      %s15 = ssub.s32 512, 512
      %16 = vsyncadd [#allocation4], %s15
      %s18 = sshll.u32 [#allocation3], 4
      %s19 = int_to_ptr.vmem [resolvable:$true] %s18
      %21 = dma.hbm_to_vmem [thread:$0]  %s1, 512, %s19, [#allocation4]
    $region9: #{tpu_custom_call.1} parent=1 // pred_fallthru
      _
    // Predicated region
    $region10: #{tpu_custom_call.1} parent=1 // pred_check
      _
    $region11: #{tpu_custom_call.1} parent=1 // pred_check_branch
      %23 = sbr.rel (0) target = $region13
    $region12: #{tpu_custom_call.1} parent=1 // pred_region
      %24 = dma.done [#allocation4], 512
    $region13: #{tpu_custom_call.1} parent=1 // pred_fallthru
      _
    %v25 = vld [vmem:[#allocation3] sm:$0xff]
    %v26 = vld [vmem:[#allocation3 + $0x8] sm:$0xff]
    %v27 = vld [vmem:[#allocation3 + $0x10] sm:$0xff]
    %v28 = vld [vmem:[#allocation3 + $0x18] sm:$0xff]
    %s29 = sld [smem:[#allocation2]]
    %v30 = vstv %s29
    %v31 = vmul.f32 %v25, %v30
    %v32 = vmul.f32 %v26, %v30
    %v33 = vmul.f32 %v27, %v30
    %v34 = vmul.f32 %v28, %v30
    %35 = vst [vmem:[#allocation6] sm:$0xff] %v31
    %36 = vst [vmem:[#allocation6 + $0x8] sm:$0xff] %v32
    %37 = vst [vmem:[#allocation6 + $0x10] sm:$0xff] %v33
    %38 = vst [vmem:[#allocation6 + $0x18] sm:$0xff] %v34
    // Predicated region
    $region14: #{tpu_custom_call.1} parent=1 // pred_check
      _
    $region15: #{tpu_custom_call.1} parent=1 // pred_check_branch
      %40 = sbr.rel (0) target = $region17
    $region16: #{tpu_custom_call.1} parent=1 // pred_region
      %s42 = ssub.s32 512, 512
      %43 = vsyncadd [#allocation5], %s42
      %s45 = sshll.u32 [#allocation6], 4
      %s46 = int_to_ptr.vmem [resolvable:$true] %s45
      %48 = dma.vmem_to_hbm [thread:$0]  %s46, 512, %s2, [#allocation5]
    $region17: #{tpu_custom_call.1} parent=1 // pred_fallthru
      _
    // Predicated region
    $region18: #{tpu_custom_call.1} parent=1 // pred_check
      _
    $region19: #{tpu_custom_call.1} parent=1 // pred_check_branch
      %50 = sbr.rel (0) target = $region21
    $region20: #{tpu_custom_call.1} parent=1 // pred_region
      %51 = dma.done [#allocation5], 512
    $region21: #{tpu_custom_call.1} parent=1 // pred_fallthru
      _
    %52 = vsyncpa [#allocation4], 1
    %53 = vsyncpa [#allocation5], 1

</llo_original>
